<compile_context>
chip_gen: v7x
topology: tpu7x:2x2x1
jax: 0.10.0
libtpu: 0.0.40
codegen_flags: <defaults>
</compile_context>

<pallas_src>
import functools

import jax
import jax.numpy as jnp
from jax.experimental import pallas as pl
from jax.experimental.pallas import tpu as pltpu

K = 5      # conv kernel size
PAD = 2    # padding=2 -> "same"-length output


def resblock_kernel(x_ref, w1_ref, b1_ref, w2_ref, b2_ref, o_ref, *, seq_len):
    # x_ref / o_ref: (bb*L, C) lane-dense flat NLC block (rows grouped by batch).
    # w*_ref: (K*C, C) bf16 im2col weights; b*_ref: (1, C) f32.
    m_rows, c = x_ref.shape
    l = seq_len

    # Position of each row within its sequence (static pattern; tiny VPU work).
    row_in_seq = jax.lax.broadcasted_iota(jnp.int32, (m_rows, 1), 0) % l

    def conv_im2col(h, w_ref, b_ref):
        # h: (m_rows, C) f32, already activated.
        zeros = jnp.zeros((PAD, c), dtype=h.dtype)
        hp = jnp.concatenate([zeros, h, zeros], axis=0)          # (m_rows + 4, C)
        taps = []
        for t in range(K):
            s = t - PAD                                          # shift in [-2, 2]
            shifted = hp[t:t + m_rows, :]                        # row i -> h[i + s]
            valid = (row_in_seq + s >= 0) & (row_in_seq + s < l) # no cross-batch bleed
            taps.append(jnp.where(valid, shifted, 0.0))
        m = jnp.concatenate(taps, axis=-1)                       # (m_rows, K*C) lane-dense
        y = jnp.dot(m.astype(w_ref.dtype), w_ref[...],
                    preferred_element_type=jnp.float32)          # single MXU matmul
        return y + b_ref[...]                                    # bias once, f32

    x = x_ref[...]
    y1 = conv_im2col(jnp.maximum(x, 0.0), w1_ref, b1_ref)
    y2 = conv_im2col(jnp.maximum(y1, 0.0), w2_ref, b2_ref)
    o_ref[...] = (x + 0.3 * y2).astype(o_ref.dtype)              # residual in f32


def prepare_resblock_params(w1, b1, w2, b2):
    """One-time prep: PyTorch (C_out, C_in, K) weights -> bf16 im2col (K*C_in, C_out)."""
    c_out, c_in, k = w1.shape
    w1p = jnp.transpose(w1, (2, 1, 0)).reshape(k * c_in, c_out).astype(jnp.bfloat16)
    w2p = jnp.transpose(w2, (2, 1, 0)).reshape(k * c_in, c_out).astype(jnp.bfloat16)
    return (w1p, b1.reshape(1, -1).astype(jnp.float32),
            w2p, b2.reshape(1, -1).astype(jnp.float32))


def resblock_pallas(x_ncw, w1p, b1p, w2p, b2p, *, bb=None):
    """x_ncw: (B, C, L) f32, PyTorch NCW layout. w*p/b*p from prepare_resblock_params."""
    B, C, L = x_ncw.shape
    if bb is None:
        bb = B
    assert B % bb == 0, "batch tile must divide batch"
    assert bb == B or (bb * L) % 8 == 0, "batch tile must give sublane-aligned rows"
    M = B * L
    Mb = bb * L
    KC = w1p.shape[0]

    # NCW -> lane-dense flat NLC, once, in XLA (outside the kernel).
    x_flat = jnp.transpose(x_ncw, (0, 2, 1)).reshape(M, C)

    flops = 2 * (2 * M * KC * C)                       # two im2col matmuls
    bytes_accessed = (2 * M * C * x_ncw.dtype.itemsize
                      + KC * C * w1p.dtype.itemsize
                      + KC * C * w2p.dtype.itemsize
                      + 2 * C * 4)

    kernel = functools.partial(resblock_kernel, seq_len=L)

    out_flat = pl.pallas_call(
        kernel,
        out_shape=jax.ShapeDtypeStruct((M, C), x_ncw.dtype),
        grid=(B // bb,),
        in_specs=[
            pl.BlockSpec((Mb, C), lambda i: (i, 0)),
            pl.BlockSpec((KC, C), lambda i: (0, 0), pipeline_mode=pl.Buffered(1)),
            pl.BlockSpec((1, C), lambda i: (0, 0), pipeline_mode=pl.Buffered(1)),
            pl.BlockSpec((KC, C), lambda i: (0, 0), pipeline_mode=pl.Buffered(1)),
            pl.BlockSpec((1, C), lambda i: (0, 0), pipeline_mode=pl.Buffered(1)),
        ],
        out_specs=pl.BlockSpec((Mb, C), lambda i: (i, 0)),
        compiler_params=pltpu.CompilerParams(
            dimension_semantics=("parallel",)),
        cost_estimate=pl.CostEstimate(flops=flops, transcendentals=0,
                                      bytes_accessed=bytes_accessed),
    )(x_flat, w1p, b1p, w2p, b2p)

    # Back to the PyTorch NCW boundary layout (single XLA transpose).
    return out_flat.reshape(B, L, C).transpose(0, 2, 1)


def resblock_reference(x_ncw, w1, b1, w2, b2):
    """Plain-JAX reference mirroring PyTorch Conv1d (NCW, OIW, padding=2), f32."""
    dn = ('NCH', 'OIH', 'NCH')
    h = jax.nn.relu(x_ncw)
    y = jax.lax.conv_general_dilated(h, w1, (1,), [(PAD, PAD)],
                                     dimension_numbers=dn) + b1[None, :, None]
    h = jax.nn.relu(y)
    y = jax.lax.conv_general_dilated(h, w2, (1,), [(PAD, PAD)],
                                     dimension_numbers=dn) + b2[None, :, None]
    return x_ncw + 0.3 * y


if __name__ == "__main__":
    # Shapes implied by the module: layer_dim=128 channels, seq_length=12, small batch.
    B, C, L = 2, 128, 12

    key = jax.random.PRNGKey(0)
    kx, kw1, kb1, kw2, kb2 = jax.random.split(key, 5)

    x = jax.random.normal(kx, (B, C, L), dtype=jnp.float32)
    # PyTorch Conv1d weight layout: (C_out, C_in, K).
    fan_in = C * K
    bound = 1.0 / (fan_in ** 0.5)
    w1 = jax.random.uniform(kw1, (C, C, K), jnp.float32, -bound, bound)
    b1 = jax.random.uniform(kb1, (C,), jnp.float32, -bound, bound)
    w2 = jax.random.uniform(kw2, (C, C, K), jnp.float32, -bound, bound)
    b2 = jax.random.uniform(kb2, (C,), jnp.float32, -bound, bound)

    # One-time parameter prep (im2col layout + bf16 cast).
    w1p, b1p, w2p, b2p = prepare_resblock_params(w1, b1, w2, b2)

    fwd = jax.jit(resblock_pallas)
    out = jax.block_until_ready(fwd(x, w1p, b1p, w2p, b2p))
    ref = jax.block_until_ready(resblock_reference(x, w1, b1, w2, b2))

    assert out.shape == (B, C, L)
    # bf16 matmul operands -> relaxed tolerance vs the f32 reference.
    assert jnp.allclose(out, ref, atol=2e-2, rtol=2e-2), "mismatch vs reference"
    print("KERNEL_OK")
</pallas_src>

<mosaic_0001>
module attributes {stable_mosaic.version = 11 : i64} {
  func.func @resblock_kernel(%arg0: i32, %arg1: memref<24x128xf32, #tpu.memory_space<vmem>>, %arg2: memref<640x128xbf16, #tpu.memory_space<vmem>>, %arg3: memref<1x128xf32, #tpu.memory_space<vmem>>, %arg4: memref<640x128xbf16, #tpu.memory_space<vmem>>, %arg5: memref<1x128xf32, #tpu.memory_space<vmem>>, %arg6: memref<24x128xf32, #tpu.memory_space<vmem>>) attributes {dimension_semantics = [#tpu.dimension_semantics<parallel>], iteration_bounds = array<i64: 1>, scalar_prefetch = 0 : i64, scratch_operands = 0 : i64, tpu.core_type = #tpu.core_type<tc>, window_params = [{transform_indices = @transform_0, window_bounds = array<i64: 24, 128>}, {pipeline_mode = #tpu.pipeline_mode<synchronous>, transform_indices = @transform_1, window_bounds = array<i64: 640, 128>}, {pipeline_mode = #tpu.pipeline_mode<synchronous>, transform_indices = @transform_2, window_bounds = array<i64: 1, 128>}, {pipeline_mode = #tpu.pipeline_mode<synchronous>, transform_indices = @transform_3, window_bounds = array<i64: 640, 128>}, {pipeline_mode = #tpu.pipeline_mode<synchronous>, transform_indices = @transform_4, window_bounds = array<i64: 1, 128>}, {transform_indices = @transform_5, window_bounds = array<i64: 24, 128>}]} {
    %0 = tpu.iota {dimensions = array<i32: 0>} : vector<24x1xi32>
    %c12_i32 = arith.constant 12 : i32
    %c0_i32 = arith.constant 0 : i32
    %1 = arith.cmpi eq, %c12_i32, %c0_i32 : i32
    %c1_i32 = arith.constant 1 : i32
    %2 = arith.select %1, %c1_i32, %c12_i32 : i32
    %3 = vector.broadcast %2 : i32 to vector<24x1xi32>
    %4 = arith.remsi %0, %3 : vector<24x1xi32>
    %c0_i32_0 = arith.constant 0 : i32
    %5 = vector.broadcast %c0_i32_0 : i32 to vector<24x1xi32>
    %6 = arith.cmpi ne, %4, %5 : vector<24x1xi32>
    %c0_i32_1 = arith.constant 0 : i32
    %7 = vector.broadcast %c0_i32_1 : i32 to vector<24x1xi32>
    %8 = arith.cmpi slt, %4, %7 : vector<24x1xi32>
    %c0_i32_2 = arith.constant 0 : i32
    %9 = arith.cmpi slt, %2, %c0_i32_2 : i32
    %10 = vector.broadcast %9 : i1 to vector<24x1xi1>
    %11 = vector.broadcast %10 : vector<24x1xi1> to vector<24x1xi1>
    %12 = arith.xori %8, %11 : vector<24x1xi1>
    %13 = arith.andi %12, %6 : vector<24x1xi1>
    %14 = vector.broadcast %2 : i32 to vector<24x1xi32>
    %15 = arith.addi %4, %14 : vector<24x1xi32>
    %16 = arith.select %13, %15, %4 : vector<24x1xi1>, vector<24x1xi32>
    %c0 = arith.constant 0 : index
    %c0_3 = arith.constant 0 : index
    %17 = vector.load %arg1[%c0, %c0_3] : memref<24x128xf32, #tpu.memory_space<vmem>>, vector<24x128xf32>
    %cst = arith.constant 0.000000e+00 : f32
    %18 = vector.broadcast %cst : f32 to vector<24x128xf32>
    %19 = arith.maximumf %17, %18 : vector<24x128xf32>
    %cst_4 = arith.constant 0.000000e+00 : f32
    %20 = vector.broadcast %cst_4 : f32 to vector<2x128xf32>
    %21 = tpu.concatenate %20, %19, %20 in 0 : vector<2x128xf32>, vector<24x128xf32>, vector<2x128xf32> -> vector<28x128xf32>
    %22 = vector.extract_strided_slice %21 {offsets = [0, 0], sizes = [24, 128], strides = [1, 1]} : vector<28x128xf32> to vector<24x128xf32>
    %c-2_i32 = arith.constant -2 : i32
    %23 = vector.broadcast %c-2_i32 : i32 to vector<24x1xi32>
    %24 = arith.addi %16, %23 : vector<24x1xi32>
    %c0_i32_5 = arith.constant 0 : i32
    %25 = vector.broadcast %c0_i32_5 : i32 to vector<24x1xi32>
    %26 = arith.cmpi sge, %24, %25 : vector<24x1xi32>
    %c-2_i32_6 = arith.constant -2 : i32
    %27 = vector.broadcast %c-2_i32_6 : i32 to vector<24x1xi32>
    %28 = arith.addi %16, %27 : vector<24x1xi32>
    %c12_i32_7 = arith.constant 12 : i32
    %29 = vector.broadcast %c12_i32_7 : i32 to vector<24x1xi32>
    %30 = arith.cmpi slt, %28, %29 : vector<24x1xi32>
    %31 = arith.andi %26, %30 : vector<24x1xi1>
    %cst_8 = arith.constant 0.000000e+00 : f32
    %32 = vector.shape_cast %31 : vector<24x1xi1> to vector<24x1xi1>
    %33 = vector.broadcast %32 : vector<24x1xi1> to vector<24x128xi1>
    %34 = vector.broadcast %cst_8 : f32 to vector<24x128xf32>
    %35 = arith.select %33, %22, %34 : vector<24x128xi1>, vector<24x128xf32>
    %36 = vector.extract_strided_slice %21 {offsets = [1, 0], sizes = [24, 128], strides = [1, 1]} : vector<28x128xf32> to vector<24x128xf32>
    %c-1_i32 = arith.constant -1 : i32
    %37 = vector.broadcast %c-1_i32 : i32 to vector<24x1xi32>
    %38 = arith.addi %16, %37 : vector<24x1xi32>
    %c0_i32_9 = arith.constant 0 : i32
    %39 = vector.broadcast %c0_i32_9 : i32 to vector<24x1xi32>
    %40 = arith.cmpi sge, %38, %39 : vector<24x1xi32>
    %c-1_i32_10 = arith.constant -1 : i32
    %41 = vector.broadcast %c-1_i32_10 : i32 to vector<24x1xi32>
    %42 = arith.addi %16, %41 : vector<24x1xi32>
    %c12_i32_11 = arith.constant 12 : i32
    %43 = vector.broadcast %c12_i32_11 : i32 to vector<24x1xi32>
    %44 = arith.cmpi slt, %42, %43 : vector<24x1xi32>
    %45 = arith.andi %40, %44 : vector<24x1xi1>
    %cst_12 = arith.constant 0.000000e+00 : f32
    %46 = vector.shape_cast %45 : vector<24x1xi1> to vector<24x1xi1>
    %47 = vector.broadcast %46 : vector<24x1xi1> to vector<24x128xi1>
    %48 = vector.broadcast %cst_12 : f32 to vector<24x128xf32>
    %49 = arith.select %47, %36, %48 : vector<24x128xi1>, vector<24x128xf32>
    %50 = vector.extract_strided_slice %21 {offsets = [2, 0], sizes = [24, 128], strides = [1, 1]} : vector<28x128xf32> to vector<24x128xf32>
    %c0_i32_13 = arith.constant 0 : i32
    %51 = vector.broadcast %c0_i32_13 : i32 to vector<24x1xi32>
    %52 = arith.addi %16, %51 : vector<24x1xi32>
    %c0_i32_14 = arith.constant 0 : i32
    %53 = vector.broadcast %c0_i32_14 : i32 to vector<24x1xi32>
    %54 = arith.cmpi sge, %52, %53 : vector<24x1xi32>
    %c0_i32_15 = arith.constant 0 : i32
    %55 = vector.broadcast %c0_i32_15 : i32 to vector<24x1xi32>
    %56 = arith.addi %16, %55 : vector<24x1xi32>
    %c12_i32_16 = arith.constant 12 : i32
    %57 = vector.broadcast %c12_i32_16 : i32 to vector<24x1xi32>
    %58 = arith.cmpi slt, %56, %57 : vector<24x1xi32>
    %59 = arith.andi %54, %58 : vector<24x1xi1>
    %cst_17 = arith.constant 0.000000e+00 : f32
    %60 = vector.shape_cast %59 : vector<24x1xi1> to vector<24x1xi1>
    %61 = vector.broadcast %60 : vector<24x1xi1> to vector<24x128xi1>
    %62 = vector.broadcast %cst_17 : f32 to vector<24x128xf32>
    %63 = arith.select %61, %50, %62 : vector<24x128xi1>, vector<24x128xf32>
    %64 = vector.extract_strided_slice %21 {offsets = [3, 0], sizes = [24, 128], strides = [1, 1]} : vector<28x128xf32> to vector<24x128xf32>
    %c1_i32_18 = arith.constant 1 : i32
    %65 = vector.broadcast %c1_i32_18 : i32 to vector<24x1xi32>
    %66 = arith.addi %16, %65 : vector<24x1xi32>
    %c0_i32_19 = arith.constant 0 : i32
    %67 = vector.broadcast %c0_i32_19 : i32 to vector<24x1xi32>
    %68 = arith.cmpi sge, %66, %67 : vector<24x1xi32>
    %c1_i32_20 = arith.constant 1 : i32
    %69 = vector.broadcast %c1_i32_20 : i32 to vector<24x1xi32>
    %70 = arith.addi %16, %69 : vector<24x1xi32>
    %c12_i32_21 = arith.constant 12 : i32
    %71 = vector.broadcast %c12_i32_21 : i32 to vector<24x1xi32>
    %72 = arith.cmpi slt, %70, %71 : vector<24x1xi32>
    %73 = arith.andi %68, %72 : vector<24x1xi1>
    %cst_22 = arith.constant 0.000000e+00 : f32
    %74 = vector.shape_cast %73 : vector<24x1xi1> to vector<24x1xi1>
    %75 = vector.broadcast %74 : vector<24x1xi1> to vector<24x128xi1>
    %76 = vector.broadcast %cst_22 : f32 to vector<24x128xf32>
    %77 = arith.select %75, %64, %76 : vector<24x128xi1>, vector<24x128xf32>
    %78 = vector.extract_strided_slice %21 {offsets = [4, 0], sizes = [24, 128], strides = [1, 1]} : vector<28x128xf32> to vector<24x128xf32>
    %c2_i32 = arith.constant 2 : i32
    %79 = vector.broadcast %c2_i32 : i32 to vector<24x1xi32>
    %80 = arith.addi %16, %79 : vector<24x1xi32>
    %c0_i32_23 = arith.constant 0 : i32
    %81 = vector.broadcast %c0_i32_23 : i32 to vector<24x1xi32>
    %82 = arith.cmpi sge, %80, %81 : vector<24x1xi32>
    %c2_i32_24 = arith.constant 2 : i32
    %83 = vector.broadcast %c2_i32_24 : i32 to vector<24x1xi32>
    %84 = arith.addi %16, %83 : vector<24x1xi32>
    %c12_i32_25 = arith.constant 12 : i32
    %85 = vector.broadcast %c12_i32_25 : i32 to vector<24x1xi32>
    %86 = arith.cmpi slt, %84, %85 : vector<24x1xi32>
    %87 = arith.andi %82, %86 : vector<24x1xi1>
    %cst_26 = arith.constant 0.000000e+00 : f32
    %88 = vector.shape_cast %87 : vector<24x1xi1> to vector<24x1xi1>
    %89 = vector.broadcast %88 : vector<24x1xi1> to vector<24x128xi1>
    %90 = vector.broadcast %cst_26 : f32 to vector<24x128xf32>
    %91 = arith.select %89, %78, %90 : vector<24x128xi1>, vector<24x128xf32>
    %92 = tpu.concatenate %35, %49, %63, %77, %91 in 1 : vector<24x128xf32>, vector<24x128xf32>, vector<24x128xf32>, vector<24x128xf32>, vector<24x128xf32> -> vector<24x640xf32>
    %93 = arith.truncf %92 : vector<24x640xf32> to vector<24x640xbf16>
    %c0_27 = arith.constant 0 : index
    %c0_28 = arith.constant 0 : index
    %94 = vector.load %arg2[%c0_27, %c0_28] : memref<640x128xbf16, #tpu.memory_space<vmem>>, vector<640x128xbf16>
    %cst_29 = arith.constant dense<0.000000e+00> : vector<24x128xf32>
    %95 = tpu.matmul %93, %94, %cst_29 {dimension_numbers = #tpu.dot_dimension_numbers<[1], [0], [0], [1], [0, 0, 1, 1], [], []>} : vector<24x640xbf16>, vector<640x128xbf16>, vector<24x128xf32> -> vector<24x128xf32>
    %c0_30 = arith.constant 0 : index
    %c0_31 = arith.constant 0 : index
    %96 = vector.load %arg3[%c0_30, %c0_31] : memref<1x128xf32, #tpu.memory_space<vmem>>, vector<1x128xf32>
    %97 = vector.broadcast %96 : vector<1x128xf32> to vector<24x128xf32>
    %98 = arith.addf %95, %97 : vector<24x128xf32>
    %cst_32 = arith.constant 0.000000e+00 : f32
    %99 = vector.broadcast %cst_32 : f32 to vector<24x128xf32>
    %100 = arith.maximumf %98, %99 : vector<24x128xf32>
    %cst_33 = arith.constant 0.000000e+00 : f32
    %101 = vector.broadcast %cst_33 : f32 to vector<2x128xf32>
    %102 = tpu.concatenate %101, %100, %101 in 0 : vector<2x128xf32>, vector<24x128xf32>, vector<2x128xf32> -> vector<28x128xf32>
    %103 = vector.extract_strided_slice %102 {offsets = [0, 0], sizes = [24, 128], strides = [1, 1]} : vector<28x128xf32> to vector<24x128xf32>
    %c-2_i32_34 = arith.constant -2 : i32
    %104 = vector.broadcast %c-2_i32_34 : i32 to vector<24x1xi32>
    %105 = arith.addi %16, %104 : vector<24x1xi32>
    %c0_i32_35 = arith.constant 0 : i32
    %106 = vector.broadcast %c0_i32_35 : i32 to vector<24x1xi32>
    %107 = arith.cmpi sge, %105, %106 : vector<24x1xi32>
    %c-2_i32_36 = arith.constant -2 : i32
    %108 = vector.broadcast %c-2_i32_36 : i32 to vector<24x1xi32>
    %109 = arith.addi %16, %108 : vector<24x1xi32>
    %c12_i32_37 = arith.constant 12 : i32
    %110 = vector.broadcast %c12_i32_37 : i32 to vector<24x1xi32>
    %111 = arith.cmpi slt, %109, %110 : vector<24x1xi32>
    %112 = arith.andi %107, %111 : vector<24x1xi1>
    %cst_38 = arith.constant 0.000000e+00 : f32
    %113 = vector.shape_cast %112 : vector<24x1xi1> to vector<24x1xi1>
    %114 = vector.broadcast %113 : vector<24x1xi1> to vector<24x128xi1>
    %115 = vector.broadcast %cst_38 : f32 to vector<24x128xf32>
    %116 = arith.select %114, %103, %115 : vector<24x128xi1>, vector<24x128xf32>
    %117 = vector.extract_strided_slice %102 {offsets = [1, 0], sizes = [24, 128], strides = [1, 1]} : vector<28x128xf32> to vector<24x128xf32>
    %c-1_i32_39 = arith.constant -1 : i32
    %118 = vector.broadcast %c-1_i32_39 : i32 to vector<24x1xi32>
    %119 = arith.addi %16, %118 : vector<24x1xi32>
    %c0_i32_40 = arith.constant 0 : i32
    %120 = vector.broadcast %c0_i32_40 : i32 to vector<24x1xi32>
    %121 = arith.cmpi sge, %119, %120 : vector<24x1xi32>
    %c-1_i32_41 = arith.constant -1 : i32
    %122 = vector.broadcast %c-1_i32_41 : i32 to vector<24x1xi32>
    %123 = arith.addi %16, %122 : vector<24x1xi32>
    %c12_i32_42 = arith.constant 12 : i32
    %124 = vector.broadcast %c12_i32_42 : i32 to vector<24x1xi32>
    %125 = arith.cmpi slt, %123, %124 : vector<24x1xi32>
    %126 = arith.andi %121, %125 : vector<24x1xi1>
    %cst_43 = arith.constant 0.000000e+00 : f32
    %127 = vector.shape_cast %126 : vector<24x1xi1> to vector<24x1xi1>
    %128 = vector.broadcast %127 : vector<24x1xi1> to vector<24x128xi1>
    %129 = vector.broadcast %cst_43 : f32 to vector<24x128xf32>
    %130 = arith.select %128, %117, %129 : vector<24x128xi1>, vector<24x128xf32>
    %131 = vector.extract_strided_slice %102 {offsets = [2, 0], sizes = [24, 128], strides = [1, 1]} : vector<28x128xf32> to vector<24x128xf32>
    %c0_i32_44 = arith.constant 0 : i32
    %132 = vector.broadcast %c0_i32_44 : i32 to vector<24x1xi32>
    %133 = arith.addi %16, %132 : vector<24x1xi32>
    %c0_i32_45 = arith.constant 0 : i32
    %134 = vector.broadcast %c0_i32_45 : i32 to vector<24x1xi32>
    %135 = arith.cmpi sge, %133, %134 : vector<24x1xi32>
    %c0_i32_46 = arith.constant 0 : i32
    %136 = vector.broadcast %c0_i32_46 : i32 to vector<24x1xi32>
    %137 = arith.addi %16, %136 : vector<24x1xi32>
    %c12_i32_47 = arith.constant 12 : i32
    %138 = vector.broadcast %c12_i32_47 : i32 to vector<24x1xi32>
    %139 = arith.cmpi slt, %137, %138 : vector<24x1xi32>
    %140 = arith.andi %135, %139 : vector<24x1xi1>
    %cst_48 = arith.constant 0.000000e+00 : f32
    %141 = vector.shape_cast %140 : vector<24x1xi1> to vector<24x1xi1>
    %142 = vector.broadcast %141 : vector<24x1xi1> to vector<24x128xi1>
    %143 = vector.broadcast %cst_48 : f32 to vector<24x128xf32>
    %144 = arith.select %142, %131, %143 : vector<24x128xi1>, vector<24x128xf32>
    %145 = vector.extract_strided_slice %102 {offsets = [3, 0], sizes = [24, 128], strides = [1, 1]} : vector<28x128xf32> to vector<24x128xf32>
    %c1_i32_49 = arith.constant 1 : i32
    %146 = vector.broadcast %c1_i32_49 : i32 to vector<24x1xi32>
    %147 = arith.addi %16, %146 : vector<24x1xi32>
    %c0_i32_50 = arith.constant 0 : i32
    %148 = vector.broadcast %c0_i32_50 : i32 to vector<24x1xi32>
    %149 = arith.cmpi sge, %147, %148 : vector<24x1xi32>
    %c1_i32_51 = arith.constant 1 : i32
    %150 = vector.broadcast %c1_i32_51 : i32 to vector<24x1xi32>
    %151 = arith.addi %16, %150 : vector<24x1xi32>
    %c12_i32_52 = arith.constant 12 : i32
    %152 = vector.broadcast %c12_i32_52 : i32 to vector<24x1xi32>
    %153 = arith.cmpi slt, %151, %152 : vector<24x1xi32>
    %154 = arith.andi %149, %153 : vector<24x1xi1>
    %cst_53 = arith.constant 0.000000e+00 : f32
    %155 = vector.shape_cast %154 : vector<24x1xi1> to vector<24x1xi1>
    %156 = vector.broadcast %155 : vector<24x1xi1> to vector<24x128xi1>
    %157 = vector.broadcast %cst_53 : f32 to vector<24x128xf32>
    %158 = arith.select %156, %145, %157 : vector<24x128xi1>, vector<24x128xf32>
    %159 = vector.extract_strided_slice %102 {offsets = [4, 0], sizes = [24, 128], strides = [1, 1]} : vector<28x128xf32> to vector<24x128xf32>
    %c2_i32_54 = arith.constant 2 : i32
    %160 = vector.broadcast %c2_i32_54 : i32 to vector<24x1xi32>
    %161 = arith.addi %16, %160 : vector<24x1xi32>
    %c0_i32_55 = arith.constant 0 : i32
    %162 = vector.broadcast %c0_i32_55 : i32 to vector<24x1xi32>
    %163 = arith.cmpi sge, %161, %162 : vector<24x1xi32>
    %c2_i32_56 = arith.constant 2 : i32
    %164 = vector.broadcast %c2_i32_56 : i32 to vector<24x1xi32>
    %165 = arith.addi %16, %164 : vector<24x1xi32>
    %c12_i32_57 = arith.constant 12 : i32
    %166 = vector.broadcast %c12_i32_57 : i32 to vector<24x1xi32>
    %167 = arith.cmpi slt, %165, %166 : vector<24x1xi32>
    %168 = arith.andi %163, %167 : vector<24x1xi1>
    %cst_58 = arith.constant 0.000000e+00 : f32
    %169 = vector.shape_cast %168 : vector<24x1xi1> to vector<24x1xi1>
    %170 = vector.broadcast %169 : vector<24x1xi1> to vector<24x128xi1>
    %171 = vector.broadcast %cst_58 : f32 to vector<24x128xf32>
    %172 = arith.select %170, %159, %171 : vector<24x128xi1>, vector<24x128xf32>
    %173 = tpu.concatenate %116, %130, %144, %158, %172 in 1 : vector<24x128xf32>, vector<24x128xf32>, vector<24x128xf32>, vector<24x128xf32>, vector<24x128xf32> -> vector<24x640xf32>
    %174 = arith.truncf %173 : vector<24x640xf32> to vector<24x640xbf16>
    %c0_59 = arith.constant 0 : index
    %c0_60 = arith.constant 0 : index
    %175 = vector.load %arg4[%c0_59, %c0_60] : memref<640x128xbf16, #tpu.memory_space<vmem>>, vector<640x128xbf16>
    %cst_61 = arith.constant dense<0.000000e+00> : vector<24x128xf32>
    %176 = tpu.matmul %174, %175, %cst_61 {dimension_numbers = #tpu.dot_dimension_numbers<[1], [0], [0], [1], [0, 0, 1, 1], [], []>} : vector<24x640xbf16>, vector<640x128xbf16>, vector<24x128xf32> -> vector<24x128xf32>
    %c0_62 = arith.constant 0 : index
    %c0_63 = arith.constant 0 : index
    %177 = vector.load %arg5[%c0_62, %c0_63] : memref<1x128xf32, #tpu.memory_space<vmem>>, vector<1x128xf32>
    %178 = vector.broadcast %177 : vector<1x128xf32> to vector<24x128xf32>
    %179 = arith.addf %176, %178 : vector<24x128xf32>
    %cst_64 = arith.constant 3.000000e-01 : f32
    %180 = vector.broadcast %cst_64 : f32 to vector<24x128xf32>
    %181 = arith.mulf %180, %179 : vector<24x128xf32>
    %182 = arith.addf %17, %181 : vector<24x128xf32>
    %c0_65 = arith.constant 0 : index
    %c0_66 = arith.constant 0 : index
    %183 = vector.load %arg6[%c0_65, %c0_66] : memref<24x128xf32, #tpu.memory_space<vmem>>, vector<24x128xf32>
    tpu.vector_store %arg6[%c0_65, %c0_66], %182 {strides = array<i32>} : memref<24x128xf32, #tpu.memory_space<vmem>>, vector<24x128xf32>,
    return
  }
  func.func @transform_0(%arg0: i32) -> (i32, i32) {
    %c0_i32 = arith.constant 0 : i32
    %c0_i32_0 = arith.constant 0 : i32
    return %arg0, %c0_i32 : i32, i32
  }
  func.func @transform_1(%arg0: i32) -> (i32, i32) {
    %c0_i32 = arith.constant 0 : i32
    %c0_i32_0 = arith.constant 0 : i32
    %c0_i32_1 = arith.constant 0 : i32
    return %c0_i32, %c0_i32_0 : i32, i32
  }
  func.func @transform_2(%arg0: i32) -> (i32, i32) {
    %c0_i32 = arith.constant 0 : i32
    %c0_i32_0 = arith.constant 0 : i32
    %c0_i32_1 = arith.constant 0 : i32
    return %c0_i32, %c0_i32_0 : i32, i32
  }
  func.func @transform_3(%arg0: i32) -> (i32, i32) {
    %c0_i32 = arith.constant 0 : i32
    %c0_i32_0 = arith.constant 0 : i32
    %c0_i32_1 = arith.constant 0 : i32
    return %c0_i32, %c0_i32_0 : i32, i32
  }
  func.func @transform_4(%arg0: i32) -> (i32, i32) {
    %c0_i32 = arith.constant 0 : i32
    %c0_i32_0 = arith.constant 0 : i32
    %c0_i32_1 = arith.constant 0 : i32
    return %c0_i32, %c0_i32_0 : i32, i32
  }
  func.func @transform_5(%arg0: i32) -> (i32, i32) {
    %c0_i32 = arith.constant 0 : i32
    %c0_i32_0 = arith.constant 0 : i32
    return %arg0, %c0_i32 : i32, i32
  }
}

</mosaic_0001>

<llo_original>
// kernel: resblock_pallas.1
$region0: #{resblock_pallas.1}
  #allocation0 [shape = 'u32[]', space=smem, size = 0x4, offset = 0x4, fixed_abs, tag = 'smem constant byte address 0x4 - core index']
  #allocation1 [shape = 'u32[144,128]{1,0:T(1,128)}', space=vmem, size = 0x12000, scoped, tag = 'internal scratch']
  %s0 = inlined_call_operand.vmem [shape: f32[24,128], index: 0, kind: input, shape index: {}]
  %s1 = inlined_call_operand.hbm [shape: bf16[640,128], index: 1, kind: input, shape index: {}]
  %s2 = inlined_call_operand.vmem [shape: f32[1,128], index: 2, kind: input, shape index: {}]
  %s3 = inlined_call_operand.hbm [shape: bf16[640,128], index: 3, kind: input, shape index: {}]
  %s4 = inlined_call_operand.vmem [shape: f32[1,128], index: 4, kind: input, shape index: {}]
  %s5 = inlined_call_operand.vmem [shape: f32[24,128], index: 5, kind: output, shape index: {}]
  %s6 = sld [smem:[#allocation0]]
  $region38: #{resblock_pallas.1} parent=0
    _
  %s8 = ssub.s32 1, %s6
  %s9 = scalar_select 0, %s8, %s6
  $region1: #{resblock_pallas.1} parent=0
    #allocation2 [shape = 'u8[163840]{0}', space=vmem, size = 0x28000, scoped, tag = 'input window, operand 1, single buffered']
    #allocation3 [shape = 's32[1]{0}', space=sflag, size = 0x4, scoped, tag = 'scoped memory for resblock_pallas.1']
    #allocation4 [shape = 'u8[163840]{0}', space=vmem, size = 0x28000, scoped, tag = 'input window, operand 3, single buffered']
    #allocation5 [shape = 's32[1]{0}', space=sflag, size = 0x4, scoped, tag = 'scoped memory for resblock_pallas.1']
    %10 = vsyncpa [#allocation3], 0
    %11 = vsyncpa [#allocation5], 0
    // Predicated region
    $region2: #{resblock_pallas.1} parent=1 // pred_check
      _
    $region3: #{resblock_pallas.1} parent=1 // pred_check_branch
      %13 = sbr.rel (0) target = $region5
    $region4: #{resblock_pallas.1} parent=1 // pred_region
      _
    $region5: #{resblock_pallas.1} parent=1 // pred_fallthru
      _
    // Predicated region
    $region6: #{resblock_pallas.1} parent=1 // pred_check
      _
    $region7: #{resblock_pallas.1} parent=1 // pred_check_branch
      %15 = sbr.rel (0) target = $region9
    $region8: #{resblock_pallas.1} parent=1 // pred_region
      %s17 = ssub.s32 5120, 5120
      %18 = vsyncadd [#allocation3], %s17
      %s19 = sshll.u32 [#allocation2], 4
      %s20 = int_to_ptr.vmem [resolvable:$true] %s19
      %25 = dma.hbm_to_vmem [thread:$0]  %s1, 5120, %s20, [#allocation3], 64, 64, 4
    $region9: #{resblock_pallas.1} parent=1 // pred_fallthru
      _
    // Predicated region
    $region10: #{resblock_pallas.1} parent=1 // pred_check
      _
    $region11: #{resblock_pallas.1} parent=1 // pred_check_branch
      %27 = sbr.rel (0) target = $region13
    $region12: #{resblock_pallas.1} parent=1 // pred_region
      _
    $region13: #{resblock_pallas.1} parent=1 // pred_fallthru
      _
    // Predicated region
    $region14: #{resblock_pallas.1} parent=1 // pred_check
      _
    $region15: #{resblock_pallas.1} parent=1 // pred_check_branch
      %29 = sbr.rel (0) target = $region17
    $region16: #{resblock_pallas.1} parent=1 // pred_region
      %s31 = ssub.s32 5120, 5120
      %32 = vsyncadd [#allocation5], %s31
      %s33 = sshll.u32 [#allocation4], 4
      %s34 = int_to_ptr.vmem [resolvable:$true] %s33
      %39 = dma.hbm_to_vmem [thread:$0]  %s3, 5120, %s34, [#allocation5], 64, 64, 4
    $region17: #{resblock_pallas.1} parent=1 // pred_fallthru
      _
    // Predicated region
    $region18: #{resblock_pallas.1} parent=1 // pred_check
      _
    $region19: #{resblock_pallas.1} parent=1 // pred_check_branch
      %41 = sbr.rel (0) target = $region21
    $region20: #{resblock_pallas.1} parent=1 // pred_region
      _
    $region21: #{resblock_pallas.1} parent=1 // pred_fallthru
      _
    // Predicated region
    $region22: #{resblock_pallas.1} parent=1 // pred_check
      _
    $region23: #{resblock_pallas.1} parent=1 // pred_check_branch
      %43 = sbr.rel (0) target = $region25
    $region24: #{resblock_pallas.1} parent=1 // pred_region
      %44 = dma.done [#allocation3], 5120
    $region25: #{resblock_pallas.1} parent=1 // pred_fallthru
      _
    // Predicated region
    $region26: #{resblock_pallas.1} parent=1 // pred_check
      _
    $region27: #{resblock_pallas.1} parent=1 // pred_check_branch
      %46 = sbr.rel (0) target = $region29
    $region28: #{resblock_pallas.1} parent=1 // pred_region
      %47 = dma.done [#allocation5], 5120
    $region29: #{resblock_pallas.1} parent=1 // pred_fallthru
      _
    %v49 = vlaneseq
    %v50 = vshrl.u32 %v49, 7
    %v51 = vadd.s32 %v50, 8
    %v52 = vadd.s32 %v50, 16
    %vm53 = vcmp.lt.s32.totalorder %v50, 0
    %v54 = vsub.s32 0, %v50
    %v55 = vsel %vm53, %v54, %v50
    %v56 = vmul.u32.u64.compose %v55, 2863311531
    %v57 = vextract.low.u32 %v56
    %v58 = vextract.high.u32 %v56
    %v59 = vshrl.u32 %v58, 3
    %v60 = vmul.u32 %v59, 12
    %v61 = vsub.s32 %v55, %v60
    %v62 = vsub.s32 0, %v61
    %v63 = vsel %vm53, %v62, %v61
    %vm64 = vcmp.lt.s32.totalorder %v51, 0
    %v65 = vsub.s32 0, %v51
    %v66 = vsel %vm64, %v65, %v51
    %v67 = vmul.u32.u64.compose %v66, 2863311531
    %v68 = vextract.low.u32 %v67
    %v69 = vextract.high.u32 %v67
    %v70 = vshrl.u32 %v69, 3
    %v71 = vmul.u32 %v70, 12
    %v72 = vsub.s32 %v66, %v71
    %v73 = vsub.s32 0, %v72
    %v74 = vsel %vm64, %v73, %v72
    %vm75 = vcmp.lt.s32.totalorder %v52, 0
    %v76 = vsub.s32 0, %v52
    %v77 = vsel %vm75, %v76, %v52
    %v78 = vmul.u32.u64.compose %v77, 2863311531
    %v79 = vextract.low.u32 %v78
    %v80 = vextract.high.u32 %v78
    %v81 = vshrl.u32 %v80, 3
    %v82 = vmul.u32 %v81, 12
    %v83 = vsub.s32 %v77, %v82
    %v84 = vsub.s32 0, %v83
    %v85 = vsel %vm75, %v84, %v83
    %vm86 = vcmp.ne.s32.totalorder %v63, 0
    %vm87 = vcmp.ne.s32.totalorder %v74, 0
    %vm88 = vcmp.ne.s32.totalorder %v85, 0
    %vm89 = vcmp.lt.s32.totalorder %v63, 0
    %vm90 = vcmp.lt.s32.totalorder %v74, 0
    %vm91 = vcmp.lt.s32.totalorder %v85, 0
    %vm92 = vmand %vm89, %vm86
    %vm93 = vmand %vm90, %vm87
    %vm94 = vmand %vm91, %vm88
    %v95 = vadd.s32 %v63, 12
    %v96 = vadd.s32 %v74, 12
    %v97 = vadd.s32 %v85, 12
    %v98 = vsel %vm92, %v95, %v63
    %v99 = vsel %vm93, %v96, %v74
    %v100 = vsel %vm94, %v97, %v85
    %v101 = vld [vmem:[%s0] sm:$0xff]
    %v102 = vld [vmem:[%s0 + $0x8] sm:$0xff]
    %v103 = vld [vmem:[%s0 + $0x10] sm:$0xff]
    %v104 = vmax.f32 %v101, 0.0
    %v105 = vmax.f32 %v102, 0.0
    %v106 = vmax.f32 %v103, 0.0
    %vm110 = vcmask 1041408
    %v111 = vrot.slane %v104, 6
    %v112 = vrot.slane %v105, 6
    %v113 = vsel %vm110, %v111, %v112
    %v114 = vrot.slane %v106, 6
    %v115 = vsel %vm110, %v112, %v114
    %v120 = vsel %vm110, 0.0, %v111
    %v121 = vsel %vm110, %v114, 0.0
    %v122 = vadd.s32 %v98, 4294967294
    %v123 = vadd.s32 %v99, 4294967294
    %v124 = vadd.s32 %v100, 4294967294
    %vm125 = vcmp.ge.s32.totalorder %v122, 0
    %vm126 = vcmp.ge.s32.totalorder %v123, 0
    %vm127 = vcmp.ge.s32.totalorder %v124, 0
    %vm128 = vcmp.lt.s32.totalorder %v122, 12
    %vm129 = vcmp.lt.s32.totalorder %v123, 12
    %vm130 = vcmp.lt.s32.totalorder %v124, 12
    %vm131 = vmand %vm125, %vm128
    %vm132 = vmand %vm126, %vm129
    %vm133 = vmand %vm127, %vm130
    %v134 = vsel %vm131, 1, 0
    %v135 = vsel %vm132, 1, 0
    %v136 = vsel %vm133, 1, 0
    %vm137 = vcmp.eq.s32.totalorder %v134, 1
    %vm138 = vcmp.eq.s32.totalorder %v135, 1
    %vm139 = vcmp.eq.s32.totalorder %v136, 1
    %v140 = vsel %vm137, %v120, 0.0
    %v141 = vsel %vm138, %v113, 0.0
    %v142 = vsel %vm139, %v115, 0.0
    %v143 = vadd.s32 %v98, 4294967295
    %v144 = vadd.s32 %v99, 4294967295
    %v145 = vadd.s32 %v100, 4294967295
    %vm146 = vcmp.ge.s32.totalorder %v143, 0
    %vm147 = vcmp.ge.s32.totalorder %v144, 0
    %vm148 = vcmp.ge.s32.totalorder %v145, 0
    %vm149 = vcmp.lt.s32.totalorder %v143, 12
    %vm150 = vcmp.lt.s32.totalorder %v144, 12
    %vm151 = vcmp.lt.s32.totalorder %v145, 12
    %vm152 = vmand %vm146, %vm149
    %vm153 = vmand %vm147, %vm150
    %vm154 = vmand %vm148, %vm151
    %v155 = vsel %vm152, 1, 0
    %v156 = vsel %vm153, 1, 0
    %v157 = vsel %vm154, 1, 0
    %vm158 = vcmp.eq.s32.totalorder %v155, 1
    %vm159 = vcmp.eq.s32.totalorder %v156, 1
    %vm160 = vcmp.eq.s32.totalorder %v157, 1
    %vm163 = vcmask 1046528
    %v164 = vrot.slane %v120, 1
    %v165 = vrot.slane %v113, 1
    %v166 = vsel %vm163, %v164, %v165
    %v167 = vrot.slane %v115, 1
    %v168 = vsel %vm163, %v165, %v167
    %v169 = vrot.slane %v121, 1
    %v170 = vsel %vm163, %v167, %v169
    %v174 = vsel %vm158, %v166, 0.0
    %v175 = vsel %vm159, %v168, 0.0
    %v176 = vsel %vm160, %v170, 0.0
    %vm177 = vcmp.ge.s32.totalorder %v98, 0
    %vm178 = vcmp.ge.s32.totalorder %v99, 0
    %vm179 = vcmp.ge.s32.totalorder %v100, 0
    %vm180 = vcmp.lt.s32.totalorder %v98, 12
    %vm181 = vcmp.lt.s32.totalorder %v99, 12
    %vm182 = vcmp.lt.s32.totalorder %v100, 12
    %vm183 = vmand %vm177, %vm180
    %vm184 = vmand %vm178, %vm181
    %vm185 = vmand %vm179, %vm182
    %v186 = vsel %vm183, 1, 0
    %v187 = vsel %vm184, 1, 0
    %v188 = vsel %vm185, 1, 0
    %vm189 = vcmp.eq.s32.totalorder %v186, 1
    %vm190 = vcmp.eq.s32.totalorder %v187, 1
    %vm191 = vcmp.eq.s32.totalorder %v188, 1
    %vm192 = vcmask 1045504
    %v193 = vrot.slane %v120, 2
    %v194 = vrot.slane %v113, 2
    %v195 = vsel %vm192, %v193, %v194
    %v196 = vrot.slane %v115, 2
    %v197 = vsel %vm192, %v194, %v196
    %v198 = vrot.slane %v121, 2
    %v199 = vsel %vm192, %v196, %v198
    %v203 = vsel %vm189, %v195, 0.0
    %v204 = vsel %vm190, %v197, 0.0
    %v205 = vsel %vm191, %v199, 0.0
    %v206 = vadd.s32 %v98, 1
    %v207 = vadd.s32 %v99, 1
    %v208 = vadd.s32 %v100, 1
    %vm209 = vcmp.ge.s32.totalorder %v206, 0
    %vm210 = vcmp.ge.s32.totalorder %v207, 0
    %vm211 = vcmp.ge.s32.totalorder %v208, 0
    %vm212 = vcmp.lt.s32.totalorder %v206, 12
    %vm213 = vcmp.lt.s32.totalorder %v207, 12
    %vm214 = vcmp.lt.s32.totalorder %v208, 12
    %vm215 = vmand %vm209, %vm212
    %vm216 = vmand %vm210, %vm213
    %vm217 = vmand %vm211, %vm214
    %v218 = vsel %vm215, 1, 0
    %v219 = vsel %vm216, 1, 0
    %v220 = vsel %vm217, 1, 0
    %vm221 = vcmp.eq.s32.totalorder %v218, 1
    %vm222 = vcmp.eq.s32.totalorder %v219, 1
    %vm223 = vcmp.eq.s32.totalorder %v220, 1
    %vm224 = vcmask 1044480
    %v225 = vrot.slane %v120, 3
    %v226 = vrot.slane %v113, 3
    %v227 = vsel %vm224, %v225, %v226
    %v228 = vrot.slane %v115, 3
    %v229 = vsel %vm224, %v226, %v228
    %v230 = vrot.slane %v121, 3
    %v231 = vsel %vm224, %v228, %v230
    %v235 = vsel %vm221, %v227, 0.0
    %v236 = vsel %vm222, %v229, 0.0
    %v237 = vsel %vm223, %v231, 0.0
    %v238 = vadd.s32 %v98, 2
    %v239 = vadd.s32 %v99, 2
    %v240 = vadd.s32 %v100, 2
    %vm241 = vcmp.ge.s32.totalorder %v238, 0
    %vm242 = vcmp.ge.s32.totalorder %v239, 0
    %vm243 = vcmp.ge.s32.totalorder %v240, 0
    %vm244 = vcmp.lt.s32.totalorder %v238, 12
    %vm245 = vcmp.lt.s32.totalorder %v239, 12
    %vm246 = vcmp.lt.s32.totalorder %v240, 12
    %vm247 = vmand %vm241, %vm244
    %vm248 = vmand %vm242, %vm245
    %vm249 = vmand %vm243, %vm246
    %v250 = vsel %vm247, 1, 0
    %v251 = vsel %vm248, 1, 0
    %v252 = vsel %vm249, 1, 0
    %vm253 = vcmp.eq.s32.totalorder %v250, 1
    %vm254 = vcmp.eq.s32.totalorder %v251, 1
    %vm255 = vcmp.eq.s32.totalorder %v252, 1
    %vm256 = vcmask 1043456
    %v257 = vrot.slane %v120, 4
    %v258 = vrot.slane %v113, 4
    %v259 = vsel %vm256, %v257, %v258
    %v260 = vrot.slane %v115, 4
    %v261 = vsel %vm256, %v258, %v260
    %v262 = vrot.slane %v121, 4
    %v263 = vsel %vm256, %v260, %v262
    %v267 = vsel %vm253, %v259, 0.0
    %v268 = vsel %vm254, %v261, 0.0
    %v269 = vsel %vm255, %v263, 0.0
    %v270 = vpack.c.bf16 %v141, %v140
    %v271 = vpack.c.bf16 %v175, %v174
    %v272 = vpack.c.bf16 %v204, %v203
    %v273 = vpack.c.bf16 %v236, %v235
    %v274 = vpack.c.bf16 %v268, %v267
    %v275 = vpack.c.bf16 %v142, %v142
    %v276 = vpack.c.bf16 %v176, %v176
    %v277 = vpack.c.bf16 %v205, %v205
    %v278 = vpack.c.bf16 %v237, %v237
    %v279 = vpack.c.bf16 %v269, %v269
    %v280 = vld [vmem:[#allocation2] sm:$0xf]
    %v281 = vld [vmem:[#allocation2 + $0x4] sm:$0xf]
    %v282 = vld [vmem:[#allocation2 + $0x8] sm:$0xf]
    %v283 = vld [vmem:[#allocation2 + $0xc] sm:$0xf]
    %v284 = vld [vmem:[#allocation2 + $0x10] sm:$0xf]
    %v285 = vld [vmem:[#allocation2 + $0x14] sm:$0xf]
    %v286 = vld [vmem:[#allocation2 + $0x18] sm:$0xf]
    %v287 = vld [vmem:[#allocation2 + $0x1c] sm:$0xf]
    %v288 = vld [vmem:[#allocation2 + $0x20] sm:$0xf]
    %v289 = vld [vmem:[#allocation2 + $0x24] sm:$0xf]
    %v290 = vld [vmem:[#allocation2 + $0x28] sm:$0xf]
    %v291 = vld [vmem:[#allocation2 + $0x2c] sm:$0xf]
    %v292 = vld [vmem:[#allocation2 + $0x30] sm:$0xf]
    %v293 = vld [vmem:[#allocation2 + $0x34] sm:$0xf]
    %v294 = vld [vmem:[#allocation2 + $0x38] sm:$0xf]
    %v295 = vld [vmem:[#allocation2 + $0x3c] sm:$0xf]
    %v296 = vld [vmem:[#allocation2 + $0x40] sm:$0xf]
    %v297 = vld [vmem:[#allocation2 + $0x44] sm:$0xf]
    %v298 = vld [vmem:[#allocation2 + $0x48] sm:$0xf]
    %v299 = vld [vmem:[#allocation2 + $0x4c] sm:$0xf]
    %v300 = vld [vmem:[#allocation2 + $0x50] sm:$0xf]
    %v301 = vld [vmem:[#allocation2 + $0x54] sm:$0xf]
    %v302 = vld [vmem:[#allocation2 + $0x58] sm:$0xf]
    %v303 = vld [vmem:[#allocation2 + $0x5c] sm:$0xf]
    %v304 = vld [vmem:[#allocation2 + $0x60] sm:$0xf]
    %v305 = vld [vmem:[#allocation2 + $0x64] sm:$0xf]
    %v306 = vld [vmem:[#allocation2 + $0x68] sm:$0xf]
    %v307 = vld [vmem:[#allocation2 + $0x6c] sm:$0xf]
    %v308 = vld [vmem:[#allocation2 + $0x70] sm:$0xf]
    %v309 = vld [vmem:[#allocation2 + $0x74] sm:$0xf]
    %v310 = vld [vmem:[#allocation2 + $0x78] sm:$0xf]
    %v311 = vld [vmem:[#allocation2 + $0x7c] sm:$0xf]
    %v312 = vld [vmem:[#allocation2 + $0x80] sm:$0xf]
    %v313 = vld [vmem:[#allocation2 + $0x84] sm:$0xf]
    %v314 = vld [vmem:[#allocation2 + $0x88] sm:$0xf]
    %v315 = vld [vmem:[#allocation2 + $0x8c] sm:$0xf]
    %v316 = vld [vmem:[#allocation2 + $0x90] sm:$0xf]
    %v317 = vld [vmem:[#allocation2 + $0x94] sm:$0xf]
    %v318 = vld [vmem:[#allocation2 + $0x98] sm:$0xf]
    %v319 = vld [vmem:[#allocation2 + $0x9c] sm:$0xf]
    %v320 = vld [vmem:[#allocation2 + $0xa0] sm:$0xf]
    %v321 = vld [vmem:[#allocation2 + $0xa4] sm:$0xf]
    %v322 = vld [vmem:[#allocation2 + $0xa8] sm:$0xf]
    %v323 = vld [vmem:[#allocation2 + $0xac] sm:$0xf]
    %v324 = vld [vmem:[#allocation2 + $0xb0] sm:$0xf]
    %v325 = vld [vmem:[#allocation2 + $0xb4] sm:$0xf]
    %v326 = vld [vmem:[#allocation2 + $0xb8] sm:$0xf]
    %v327 = vld [vmem:[#allocation2 + $0xbc] sm:$0xf]
    %v328 = vld [vmem:[#allocation2 + $0xc0] sm:$0xf]
    %v329 = vld [vmem:[#allocation2 + $0xc4] sm:$0xf]
    %v330 = vld [vmem:[#allocation2 + $0xc8] sm:$0xf]
    %v331 = vld [vmem:[#allocation2 + $0xcc] sm:$0xf]
    %v332 = vld [vmem:[#allocation2 + $0xd0] sm:$0xf]
    %v333 = vld [vmem:[#allocation2 + $0xd4] sm:$0xf]
    %v334 = vld [vmem:[#allocation2 + $0xd8] sm:$0xf]
    %v335 = vld [vmem:[#allocation2 + $0xdc] sm:$0xf]
    %v336 = vld [vmem:[#allocation2 + $0xe0] sm:$0xf]
    %v337 = vld [vmem:[#allocation2 + $0xe4] sm:$0xf]
    %v338 = vld [vmem:[#allocation2 + $0xe8] sm:$0xf]
    %v339 = vld [vmem:[#allocation2 + $0xec] sm:$0xf]
    %v340 = vld [vmem:[#allocation2 + $0xf0] sm:$0xf]
    %v341 = vld [vmem:[#allocation2 + $0xf4] sm:$0xf]
    %v342 = vld [vmem:[#allocation2 + $0xf8] sm:$0xf]
    %v343 = vld [vmem:[#allocation2 + $0xfc] sm:$0xf]
    %v344 = vld [vmem:[#allocation2 + $0x100] sm:$0xf]
    %v345 = vld [vmem:[#allocation2 + $0x104] sm:$0xf]
    %v346 = vld [vmem:[#allocation2 + $0x108] sm:$0xf]
    %v347 = vld [vmem:[#allocation2 + $0x10c] sm:$0xf]
    %v348 = vld [vmem:[#allocation2 + $0x110] sm:$0xf]
    %v349 = vld [vmem:[#allocation2 + $0x114] sm:$0xf]
    %v350 = vld [vmem:[#allocation2 + $0x118] sm:$0xf]
    %v351 = vld [vmem:[#allocation2 + $0x11c] sm:$0xf]
    %v352 = vld [vmem:[#allocation2 + $0x120] sm:$0xf]
    %v353 = vld [vmem:[#allocation2 + $0x124] sm:$0xf]
    %v354 = vld [vmem:[#allocation2 + $0x128] sm:$0xf]
    %v355 = vld [vmem:[#allocation2 + $0x12c] sm:$0xf]
    %v356 = vld [vmem:[#allocation2 + $0x130] sm:$0xf]
    %v357 = vld [vmem:[#allocation2 + $0x134] sm:$0xf]
    %v358 = vld [vmem:[#allocation2 + $0x138] sm:$0xf]
    %v359 = vld [vmem:[#allocation2 + $0x13c] sm:$0xf]
    %v360 = vld [vmem:[%s2] sm:$0x1]
    %v362 = vlaneseq
    %v363 = vshrl.u32 %v362, 7
    %v364 = vsub.s32 0, %v363
    %v365 = vrot.slane %v360, %v364
    %v447 = vunpack.c.l.b16 %v280
    %v448 = vunpack.c.l.b16 %v281
    %v449 = vunpack.c.l.b16 %v282
    %v450 = vunpack.c.l.b16 %v283
    %v451 = vunpack.c.l.b16 %v284
    %v452 = vunpack.c.l.b16 %v285
    %v453 = vunpack.c.l.b16 %v286
    %v454 = vunpack.c.l.b16 %v287
    %v455 = vunpack.c.l.b16 %v288
    %v456 = vunpack.c.l.b16 %v289
    %v457 = vunpack.c.l.b16 %v290
    %v458 = vunpack.c.l.b16 %v291
    %v459 = vunpack.c.l.b16 %v292
    %v460 = vunpack.c.l.b16 %v293
    %v461 = vunpack.c.l.b16 %v294
    %v462 = vunpack.c.l.b16 %v295
    %v463 = vunpack.c.l.b16 %v296
    %v464 = vunpack.c.l.b16 %v297
    %v465 = vunpack.c.l.b16 %v298
    %v466 = vunpack.c.l.b16 %v299
    %v467 = vunpack.c.l.b16 %v300
    %v468 = vunpack.c.l.b16 %v301
    %v469 = vunpack.c.l.b16 %v302
    %v470 = vunpack.c.l.b16 %v303
    %v471 = vunpack.c.l.b16 %v304
    %v472 = vunpack.c.l.b16 %v305
    %v473 = vunpack.c.l.b16 %v306
    %v474 = vunpack.c.l.b16 %v307
    %v475 = vunpack.c.l.b16 %v308
    %v476 = vunpack.c.l.b16 %v309
    %v477 = vunpack.c.l.b16 %v310
    %v478 = vunpack.c.l.b16 %v311
    %v479 = vunpack.c.l.b16 %v312
    %v480 = vunpack.c.l.b16 %v313
    %v481 = vunpack.c.l.b16 %v314
    %v482 = vunpack.c.l.b16 %v315
    %v483 = vunpack.c.l.b16 %v316
    %v484 = vunpack.c.l.b16 %v317
    %v485 = vunpack.c.l.b16 %v318
    %v486 = vunpack.c.l.b16 %v319
    %v487 = vunpack.c.l.b16 %v320
    %v488 = vunpack.c.l.b16 %v321
    %v489 = vunpack.c.l.b16 %v322
    %v490 = vunpack.c.l.b16 %v323
    %v491 = vunpack.c.l.b16 %v324
    %v492 = vunpack.c.l.b16 %v325
    %v493 = vunpack.c.l.b16 %v326
    %v494 = vunpack.c.l.b16 %v327
    %v495 = vunpack.c.l.b16 %v328
    %v496 = vunpack.c.l.b16 %v329
    %v497 = vunpack.c.l.b16 %v330
    %v498 = vunpack.c.l.b16 %v331
    %v499 = vunpack.c.l.b16 %v332
    %v500 = vunpack.c.l.b16 %v333
    %v501 = vunpack.c.l.b16 %v334
    %v502 = vunpack.c.l.b16 %v335
    %v503 = vunpack.c.l.b16 %v336
    %v504 = vunpack.c.l.b16 %v337
    %v505 = vunpack.c.l.b16 %v338
    %v506 = vunpack.c.l.b16 %v339
    %v507 = vunpack.c.l.b16 %v340
    %v508 = vunpack.c.l.b16 %v341
    %v509 = vunpack.c.l.b16 %v342
    %v510 = vunpack.c.l.b16 %v343
    %v511 = vunpack.c.l.b16 %v344
    %v512 = vunpack.c.l.b16 %v345
    %v513 = vunpack.c.l.b16 %v346
    %v514 = vunpack.c.l.b16 %v347
    %v515 = vunpack.c.l.b16 %v348
    %v516 = vunpack.c.l.b16 %v349
    %v517 = vunpack.c.l.b16 %v350
    %v518 = vunpack.c.l.b16 %v351
    %v519 = vunpack.c.l.b16 %v352
    %v520 = vunpack.c.l.b16 %v353
    %v521 = vunpack.c.l.b16 %v354
    %v522 = vunpack.c.l.b16 %v355
    %v523 = vunpack.c.l.b16 %v356
    %v524 = vunpack.c.l.b16 %v357
    %v525 = vunpack.c.l.b16 %v358
    %v526 = vunpack.c.l.b16 %v359
    %v527 = vpack.c.b16 %v448, %v447
    %v528 = vpack.c.b16 %v450, %v449
    %v529 = vpack.c.b16 %v452, %v451
    %v530 = vpack.c.b16 %v454, %v453
    %v531 = vpack.c.b16 %v456, %v455
    %v532 = vpack.c.b16 %v458, %v457
    %v533 = vpack.c.b16 %v460, %v459
    %v534 = vpack.c.b16 %v462, %v461
    %v535 = vpack.c.b16 %v464, %v463
    %v536 = vpack.c.b16 %v466, %v465
    %v537 = vpack.c.b16 %v468, %v467
    %v538 = vpack.c.b16 %v470, %v469
    %v539 = vpack.c.b16 %v472, %v471
    %v540 = vpack.c.b16 %v474, %v473
    %v541 = vpack.c.b16 %v476, %v475
    %v542 = vpack.c.b16 %v478, %v477
    %v543 = vpack.c.b16 %v480, %v479
    %v544 = vpack.c.b16 %v482, %v481
    %v545 = vpack.c.b16 %v484, %v483
    %v546 = vpack.c.b16 %v486, %v485
    %v547 = vpack.c.b16 %v488, %v487
    %v548 = vpack.c.b16 %v490, %v489
    %v549 = vpack.c.b16 %v492, %v491
    %v550 = vpack.c.b16 %v494, %v493
    %v551 = vpack.c.b16 %v496, %v495
    %v552 = vpack.c.b16 %v498, %v497
    %v553 = vpack.c.b16 %v500, %v499
    %v554 = vpack.c.b16 %v502, %v501
    %v555 = vpack.c.b16 %v504, %v503
    %v556 = vpack.c.b16 %v506, %v505
    %v557 = vpack.c.b16 %v508, %v507
    %v558 = vpack.c.b16 %v510, %v509
    %v559 = vpack.c.b16 %v512, %v511
    %v560 = vpack.c.b16 %v514, %v513
    %v561 = vpack.c.b16 %v516, %v515
    %v562 = vpack.c.b16 %v518, %v517
    %v563 = vpack.c.b16 %v520, %v519
    %v564 = vpack.c.b16 %v522, %v521
    %v565 = vpack.c.b16 %v524, %v523
    %v566 = vpack.c.b16 %v526, %v525
    %607 = vmatprep.subr.bf16.mxu0 0
    %608 = vmatpush1.bf16.msra.mxu0 %v527
    %609 = vmatprep.subr.bf16.mxu0 0
    %610 = vmatpush1.bf16.msra.mxu0 %v528
    %611 = vmatprep.subr.bf16.mxu0 0
    %612 = vmatpush1.bf16.msra.mxu0 %v529
    %613 = vmatprep.subr.bf16.mxu0 0
    %614 = vmatpush1.bf16.msra.mxu0 %v530
    %615 = vmatprep.subr.bf16.mxu0 0
    %616 = vmatpush1.bf16.msra.mxu0 %v531
    %617 = vmatprep.subr.bf16.mxu0 0
    %618 = vmatpush1.bf16.msra.mxu0 %v532
    %619 = vmatprep.subr.bf16.mxu0 0
    %620 = vmatpush1.bf16.msra.mxu0 %v533
    %621 = vmatprep.subr.bf16.mxu0 0
    %622 = vmatpush1.bf16.msra.mxu0 %v534
    %623 = vmatprep.subr.bf16.mxu0 0
    %624 = vmatpush1.bf16.msra.mxu0 %v535
    %625 = vmatprep.subr.bf16.mxu0 0
    %626 = vmatpush1.bf16.msra.mxu0 %v536
    %627 = vmatprep.subr.bf16.mxu0 0
    %628 = vmatpush1.bf16.msra.mxu0 %v537
    %629 = vmatprep.subr.bf16.mxu0 0
    %630 = vmatpush1.bf16.msra.mxu0 %v538
    %631 = vmatprep.subr.bf16.mxu0 0
    %632 = vmatpush1.bf16.msra.mxu0 %v539
    %633 = vmatprep.subr.bf16.mxu0 0
    %634 = vmatpush1.bf16.msra.mxu0 %v540
    %635 = vmatprep.subr.bf16.mxu0 0
    %636 = vmatpush1.bf16.msra.mxu0 %v541
    %637 = vmatprep.subr.bf16.mxu0 0
    %638 = vmatpush1.bf16.msra.mxu0 %v542
    %639 = vmatprep.mubr.bf16.mxu0 %v271
    %640 = vmatmul.mubr.bf16.gmra.mrb[0].mxu0 %v270
    %v641 = vpop.f32.mrb[0].mxu0
    %v642 = vadd.f32 %v365, %v641
    %v643 = vpop.f32.mrb[0].mxu0
    %v644 = vpop.f32.mrb[0].mxu0
    %v645 = vadd.f32 %v365, %v644
    %v646 = vpop.f32.mrb[0].mxu0
    %647 = vmatprep.mubr.bf16.mxu0 %v276
    %648 = vmatmul.mubr.bf16.gmra.mrb[0].mxu0 %v275
    %v649 = vpop.f32.mrb[0].mxu0
    %v650 = vadd.f32 %v365, %v649
    %v651 = vpop.f32.mrb[0].mxu0
    %v652 = vpop.f32.mrb[0].mxu0
    %v653 = vpop.f32.mrb[0].mxu0
    %654 = vdwg.mxu0
    %655 = vmatprep.subr.bf16.mxu0 0
    %656 = vmatpush1.bf16.msra.mxu0 %v543
    %657 = vmatprep.subr.bf16.mxu0 0
    %658 = vmatpush1.bf16.msra.mxu0 %v544
    %659 = vmatprep.subr.bf16.mxu0 0
    %660 = vmatpush1.bf16.msra.mxu0 %v545
    %661 = vmatprep.subr.bf16.mxu0 0
    %662 = vmatpush1.bf16.msra.mxu0 %v546
    %663 = vmatprep.subr.bf16.mxu0 0
    %664 = vmatpush1.bf16.msra.mxu0 %v547
    %665 = vmatprep.subr.bf16.mxu0 0
    %666 = vmatpush1.bf16.msra.mxu0 %v548
    %667 = vmatprep.subr.bf16.mxu0 0
    %668 = vmatpush1.bf16.msra.mxu0 %v549
    %669 = vmatprep.subr.bf16.mxu0 0
    %670 = vmatpush1.bf16.msra.mxu0 %v550
    %671 = vmatprep.subr.bf16.mxu0 0
    %672 = vmatpush1.bf16.msra.mxu0 %v551
    %673 = vmatprep.subr.bf16.mxu0 0
    %674 = vmatpush1.bf16.msra.mxu0 %v552
    %675 = vmatprep.subr.bf16.mxu0 0
    %676 = vmatpush1.bf16.msra.mxu0 %v553
    %677 = vmatprep.subr.bf16.mxu0 0
    %678 = vmatpush1.bf16.msra.mxu0 %v554
    %679 = vmatprep.subr.bf16.mxu0 0
    %680 = vmatpush1.bf16.msra.mxu0 %v555
    %681 = vmatprep.subr.bf16.mxu0 0
    %682 = vmatpush1.bf16.msra.mxu0 %v556
    %683 = vmatprep.subr.bf16.mxu0 0
    %684 = vmatpush1.bf16.msra.mxu0 %v557
    %685 = vmatprep.subr.bf16.mxu0 0
    %686 = vmatpush1.bf16.msra.mxu0 %v558
    %687 = vmatprep.mubr.bf16.mxu0 %v273
    %688 = vmatmul.mubr.bf16.gmra.mrb[0].mxu0 %v272
    %v689 = vpop.f32.mrb[0].mxu0
    %v690 = vadd.f32 %v642, %v689
    %v691 = vpop.f32.mrb[0].mxu0
    %v692 = vpop.f32.mrb[0].mxu0
    %v693 = vadd.f32 %v645, %v692
    %v694 = vpop.f32.mrb[0].mxu0
    %695 = vmatprep.mubr.bf16.mxu0 %v278
    %696 = vmatmul.mubr.bf16.gmra.mrb[0].mxu0 %v277
    %v697 = vpop.f32.mrb[0].mxu0
    %v698 = vadd.f32 %v650, %v697
    %v699 = vpop.f32.mrb[0].mxu0
    %v700 = vpop.f32.mrb[0].mxu0
    %v701 = vpop.f32.mrb[0].mxu0
    %702 = vdwg.mxu0
    %703 = vmatprep.subr.bf16.mxu0 0
    %704 = vmatpush1.bf16.msra.mxu0 %v559
    %705 = vmatprep.subr.bf16.mxu0 0
    %706 = vmatpush1.bf16.msra.mxu0 %v560
    %707 = vmatprep.subr.bf16.mxu0 0
    %708 = vmatpush1.bf16.msra.mxu0 %v561
    %709 = vmatprep.subr.bf16.mxu0 0
    %710 = vmatpush1.bf16.msra.mxu0 %v562
    %711 = vmatprep.subr.bf16.mxu0 0
    %712 = vmatpush1.bf16.msra.mxu0 %v563
    %713 = vmatprep.subr.bf16.mxu0 0
    %714 = vmatpush1.bf16.msra.mxu0 %v564
    %715 = vmatprep.subr.bf16.mxu0 0
    %716 = vmatpush1.bf16.msra.mxu0 %v565
    %717 = vmatprep.subr.bf16.mxu0 0
    %718 = vmatpush1.bf16.msra.mxu0 %v566
    %719 = vmatprep.subr.bf16.mxu0 0
    %720 = vmatpush1.bf16.msra.mxu0 0
    %721 = vmatprep.subr.bf16.mxu0 0
    %722 = vmatpush1.bf16.msra.mxu0 0
    %723 = vmatprep.subr.bf16.mxu0 0
    %724 = vmatpush1.bf16.msra.mxu0 0
    %725 = vmatprep.subr.bf16.mxu0 0
    %726 = vmatpush1.bf16.msra.mxu0 0
    %727 = vmatprep.subr.bf16.mxu0 0
    %728 = vmatpush1.bf16.msra.mxu0 0
    %729 = vmatprep.subr.bf16.mxu0 0
    %730 = vmatpush1.bf16.msra.mxu0 0
    %731 = vmatprep.subr.bf16.mxu0 0
    %732 = vmatpush1.bf16.msra.mxu0 0
    %733 = vmatprep.subr.bf16.mxu0 0
    %734 = vmatpush1.bf16.msra.mxu0 0
    %735 = vmatprep.mubr.bf16.mxu0 0
    %736 = vmatmul.mubr.bf16.gmra.mrb[0].mxu0 %v274
    %v737 = vpop.f32.mrb[0].mxu0
    %v738 = vadd.f32 %v690, %v737
    %v739 = vpop.f32.mrb[0].mxu0
    %v740 = vpop.f32.mrb[0].mxu0
    %v741 = vadd.f32 %v693, %v740
    %v742 = vpop.f32.mrb[0].mxu0
    %743 = vmatprep.mubr.bf16.mxu0 0
    %744 = vmatmul.mubr.bf16.gmra.mrb[0].mxu0 %v279
    %v745 = vpop.f32.mrb[0].mxu0
    %v746 = vadd.f32 %v698, %v745
    %v747 = vpop.f32.mrb[0].mxu0
    %v748 = vpop.f32.mrb[0].mxu0
    %v749 = vpop.f32.mrb[0].mxu0
    %750 = vdwg.mxu0
    %v751 = vmax.f32 %v738, 0.0
    %v752 = vmax.f32 %v741, 0.0
    %v753 = vmax.f32 %v746, 0.0
    %v757 = vrot.slane %v751, 6
    %v758 = vrot.slane %v752, 6
    %v759 = vsel %vm110, %v757, %v758
    %v760 = vrot.slane %v753, 6
    %v761 = vsel %vm110, %v758, %v760
    %v766 = vsel %vm110, 0.0, %v757
    %v767 = vsel %vm110, %v760, 0.0
    %v768 = vsel %vm137, %v766, 0.0
    %v769 = vsel %vm138, %v759, 0.0
    %v770 = vsel %vm139, %v761, 0.0
    %v773 = vrot.slane %v766, 1
    %v774 = vrot.slane %v759, 1
    %v775 = vsel %vm163, %v773, %v774
    %v776 = vrot.slane %v761, 1
    %v777 = vsel %vm163, %v774, %v776
    %v778 = vrot.slane %v767, 1
    %v779 = vsel %vm163, %v776, %v778
    %v783 = vsel %vm158, %v775, 0.0
    %v784 = vsel %vm159, %v777, 0.0
    %v785 = vsel %vm160, %v779, 0.0
    %v786 = vrot.slane %v766, 2
    %v787 = vrot.slane %v759, 2
    %v788 = vsel %vm192, %v786, %v787
    %v789 = vrot.slane %v761, 2
    %v790 = vsel %vm192, %v787, %v789
    %v791 = vrot.slane %v767, 2
    %v792 = vsel %vm192, %v789, %v791
    %v796 = vsel %vm189, %v788, 0.0
    %v797 = vsel %vm190, %v790, 0.0
    %v798 = vsel %vm191, %v792, 0.0
    %v799 = vrot.slane %v766, 3
    %v800 = vrot.slane %v759, 3
    %v801 = vsel %vm224, %v799, %v800
    %v802 = vrot.slane %v761, 3
    %v803 = vsel %vm224, %v800, %v802
    %v804 = vrot.slane %v767, 3
    %v805 = vsel %vm224, %v802, %v804
    %v809 = vsel %vm221, %v801, 0.0
    %v810 = vsel %vm222, %v803, 0.0
    %v811 = vsel %vm223, %v805, 0.0
    %v812 = vrot.slane %v766, 4
    %v813 = vrot.slane %v759, 4
    %v814 = vsel %vm256, %v812, %v813
    %v815 = vrot.slane %v761, 4
    %v816 = vsel %vm256, %v813, %v815
    %v817 = vrot.slane %v767, 4
    %v818 = vsel %vm256, %v815, %v817
    %v822 = vsel %vm253, %v814, 0.0
    %v823 = vsel %vm254, %v816, 0.0
    %v824 = vsel %vm255, %v818, 0.0
    %v825 = vpack.c.bf16 %v769, %v768
    %v826 = vpack.c.bf16 %v784, %v783
    %v827 = vpack.c.bf16 %v797, %v796
    %v828 = vpack.c.bf16 %v810, %v809
    %v829 = vpack.c.bf16 %v823, %v822
    %v830 = vpack.c.bf16 %v770, %v770
    %v831 = vpack.c.bf16 %v785, %v785
    %v832 = vpack.c.bf16 %v798, %v798
    %v833 = vpack.c.bf16 %v811, %v811
    %v834 = vpack.c.bf16 %v824, %v824
    %v835 = vld [vmem:[#allocation4] sm:$0xf]
    %v836 = vld [vmem:[#allocation4 + $0x4] sm:$0xf]
    %v837 = vld [vmem:[#allocation4 + $0x8] sm:$0xf]
    %v838 = vld [vmem:[#allocation4 + $0xc] sm:$0xf]
    %v839 = vld [vmem:[#allocation4 + $0x10] sm:$0xf]
    %v840 = vld [vmem:[#allocation4 + $0x14] sm:$0xf]
    %v841 = vld [vmem:[#allocation4 + $0x18] sm:$0xf]
    %v842 = vld [vmem:[#allocation4 + $0x1c] sm:$0xf]
    %v843 = vld [vmem:[#allocation4 + $0x20] sm:$0xf]
    %v844 = vld [vmem:[#allocation4 + $0x24] sm:$0xf]
    %v845 = vld [vmem:[#allocation4 + $0x28] sm:$0xf]
    %v846 = vld [vmem:[#allocation4 + $0x2c] sm:$0xf]
    %v847 = vld [vmem:[#allocation4 + $0x30] sm:$0xf]
    %v848 = vld [vmem:[#allocation4 + $0x34] sm:$0xf]
    %v849 = vld [vmem:[#allocation4 + $0x38] sm:$0xf]
    %v850 = vld [vmem:[#allocation4 + $0x3c] sm:$0xf]
    %v851 = vld [vmem:[#allocation4 + $0x40] sm:$0xf]
    %v852 = vld [vmem:[#allocation4 + $0x44] sm:$0xf]
    %v853 = vld [vmem:[#allocation4 + $0x48] sm:$0xf]
    %v854 = vld [vmem:[#allocation4 + $0x4c] sm:$0xf]
    %v855 = vld [vmem:[#allocation4 + $0x50] sm:$0xf]
    %v856 = vld [vmem:[#allocation4 + $0x54] sm:$0xf]
    %v857 = vld [vmem:[#allocation4 + $0x58] sm:$0xf]
    %v858 = vld [vmem:[#allocation4 + $0x5c] sm:$0xf]
    %v859 = vld [vmem:[#allocation4 + $0x60] sm:$0xf]
    %v860 = vld [vmem:[#allocation4 + $0x64] sm:$0xf]
    %v861 = vld [vmem:[#allocation4 + $0x68] sm:$0xf]
    %v862 = vld [vmem:[#allocation4 + $0x6c] sm:$0xf]
    %v863 = vld [vmem:[#allocation4 + $0x70] sm:$0xf]
    %v864 = vld [vmem:[#allocation4 + $0x74] sm:$0xf]
    %v865 = vld [vmem:[#allocation4 + $0x78] sm:$0xf]
    %v866 = vld [vmem:[#allocation4 + $0x7c] sm:$0xf]
    %v867 = vld [vmem:[#allocation4 + $0x80] sm:$0xf]
    %v868 = vld [vmem:[#allocation4 + $0x84] sm:$0xf]
    %v869 = vld [vmem:[#allocation4 + $0x88] sm:$0xf]
    %v870 = vld [vmem:[#allocation4 + $0x8c] sm:$0xf]
    %v871 = vld [vmem:[#allocation4 + $0x90] sm:$0xf]
    %v872 = vld [vmem:[#allocation4 + $0x94] sm:$0xf]
    %v873 = vld [vmem:[#allocation4 + $0x98] sm:$0xf]
    %v874 = vld [vmem:[#allocation4 + $0x9c] sm:$0xf]
    %v875 = vld [vmem:[#allocation4 + $0xa0] sm:$0xf]
    %v876 = vld [vmem:[#allocation4 + $0xa4] sm:$0xf]
    %v877 = vld [vmem:[#allocation4 + $0xa8] sm:$0xf]
    %v878 = vld [vmem:[#allocation4 + $0xac] sm:$0xf]
    %v879 = vld [vmem:[#allocation4 + $0xb0] sm:$0xf]
    %v880 = vld [vmem:[#allocation4 + $0xb4] sm:$0xf]
    %v881 = vld [vmem:[#allocation4 + $0xb8] sm:$0xf]
    %v882 = vld [vmem:[#allocation4 + $0xbc] sm:$0xf]
    %v883 = vld [vmem:[#allocation4 + $0xc0] sm:$0xf]
    %v884 = vld [vmem:[#allocation4 + $0xc4] sm:$0xf]
    %v885 = vld [vmem:[#allocation4 + $0xc8] sm:$0xf]
    %v886 = vld [vmem:[#allocation4 + $0xcc] sm:$0xf]
    %v887 = vld [vmem:[#allocation4 + $0xd0] sm:$0xf]
    %v888 = vld [vmem:[#allocation4 + $0xd4] sm:$0xf]
    %v889 = vld [vmem:[#allocation4 + $0xd8] sm:$0xf]
    %v890 = vld [vmem:[#allocation4 + $0xdc] sm:$0xf]
    %v891 = vld [vmem:[#allocation4 + $0xe0] sm:$0xf]
    %v892 = vld [vmem:[#allocation4 + $0xe4] sm:$0xf]
    %v893 = vld [vmem:[#allocation4 + $0xe8] sm:$0xf]
    %v894 = vld [vmem:[#allocation4 + $0xec] sm:$0xf]
    %v895 = vld [vmem:[#allocation4 + $0xf0] sm:$0xf]
    %v896 = vld [vmem:[#allocation4 + $0xf4] sm:$0xf]
    %v897 = vld [vmem:[#allocation4 + $0xf8] sm:$0xf]
    %v898 = vld [vmem:[#allocation4 + $0xfc] sm:$0xf]
    %v899 = vld [vmem:[#allocation4 + $0x100] sm:$0xf]
    %v900 = vld [vmem:[#allocation4 + $0x104] sm:$0xf]
    %v901 = vld [vmem:[#allocation4 + $0x108] sm:$0xf]
    %v902 = vld [vmem:[#allocation4 + $0x10c] sm:$0xf]
    %v903 = vld [vmem:[#allocation4 + $0x110] sm:$0xf]
    %v904 = vld [vmem:[#allocation4 + $0x114] sm:$0xf]
    %v905 = vld [vmem:[#allocation4 + $0x118] sm:$0xf]
    %v906 = vld [vmem:[#allocation4 + $0x11c] sm:$0xf]
    %v907 = vld [vmem:[#allocation4 + $0x120] sm:$0xf]
    %v908 = vld [vmem:[#allocation4 + $0x124] sm:$0xf]
    %v909 = vld [vmem:[#allocation4 + $0x128] sm:$0xf]
    %v910 = vld [vmem:[#allocation4 + $0x12c] sm:$0xf]
    %v911 = vld [vmem:[#allocation4 + $0x130] sm:$0xf]
    %v912 = vld [vmem:[#allocation4 + $0x134] sm:$0xf]
    %v913 = vld [vmem:[#allocation4 + $0x138] sm:$0xf]
    %v914 = vld [vmem:[#allocation4 + $0x13c] sm:$0xf]
    %v915 = vld [vmem:[%s4] sm:$0x1]
    %v917 = vlaneseq
    %v918 = vshrl.u32 %v917, 7
    %v919 = vsub.s32 0, %v918
    %v920 = vrot.slane %v915, %v919
    %v1002 = vunpack.c.l.b16 %v835
    %v1003 = vunpack.c.l.b16 %v836
    %v1004 = vunpack.c.l.b16 %v837
    %v1005 = vunpack.c.l.b16 %v838
    %v1006 = vunpack.c.l.b16 %v839
    %v1007 = vunpack.c.l.b16 %v840
    %v1008 = vunpack.c.l.b16 %v841
    %v1009 = vunpack.c.l.b16 %v842
    %v1010 = vunpack.c.l.b16 %v843
    %v1011 = vunpack.c.l.b16 %v844
    %v1012 = vunpack.c.l.b16 %v845
    %v1013 = vunpack.c.l.b16 %v846
    %v1014 = vunpack.c.l.b16 %v847
    %v1015 = vunpack.c.l.b16 %v848
    %v1016 = vunpack.c.l.b16 %v849
    %v1017 = vunpack.c.l.b16 %v850
    %v1018 = vunpack.c.l.b16 %v851
    %v1019 = vunpack.c.l.b16 %v852
    %v1020 = vunpack.c.l.b16 %v853
    %v1021 = vunpack.c.l.b16 %v854
    %v1022 = vunpack.c.l.b16 %v855
    %v1023 = vunpack.c.l.b16 %v856
    %v1024 = vunpack.c.l.b16 %v857
    %v1025 = vunpack.c.l.b16 %v858
    %v1026 = vunpack.c.l.b16 %v859
    %v1027 = vunpack.c.l.b16 %v860
    %v1028 = vunpack.c.l.b16 %v861
    %v1029 = vunpack.c.l.b16 %v862
    %v1030 = vunpack.c.l.b16 %v863
    %v1031 = vunpack.c.l.b16 %v864
    %v1032 = vunpack.c.l.b16 %v865
    %v1033 = vunpack.c.l.b16 %v866
    %v1034 = vunpack.c.l.b16 %v867
    %v1035 = vunpack.c.l.b16 %v868
    %v1036 = vunpack.c.l.b16 %v869
    %v1037 = vunpack.c.l.b16 %v870
    %v1038 = vunpack.c.l.b16 %v871
    %v1039 = vunpack.c.l.b16 %v872
    %v1040 = vunpack.c.l.b16 %v873
    %v1041 = vunpack.c.l.b16 %v874
    %v1042 = vunpack.c.l.b16 %v875
    %v1043 = vunpack.c.l.b16 %v876
    %v1044 = vunpack.c.l.b16 %v877
    %v1045 = vunpack.c.l.b16 %v878
    %v1046 = vunpack.c.l.b16 %v879
    %v1047 = vunpack.c.l.b16 %v880
    %v1048 = vunpack.c.l.b16 %v881
    %v1049 = vunpack.c.l.b16 %v882
    %v1050 = vunpack.c.l.b16 %v883
    %v1051 = vunpack.c.l.b16 %v884
    %v1052 = vunpack.c.l.b16 %v885
    %v1053 = vunpack.c.l.b16 %v886
    %v1054 = vunpack.c.l.b16 %v887
    %v1055 = vunpack.c.l.b16 %v888
    %v1056 = vunpack.c.l.b16 %v889
    %v1057 = vunpack.c.l.b16 %v890
    %v1058 = vunpack.c.l.b16 %v891
    %v1059 = vunpack.c.l.b16 %v892
    %v1060 = vunpack.c.l.b16 %v893
    %v1061 = vunpack.c.l.b16 %v894
    %v1062 = vunpack.c.l.b16 %v895
    %v1063 = vunpack.c.l.b16 %v896
    %v1064 = vunpack.c.l.b16 %v897
    %v1065 = vunpack.c.l.b16 %v898
    %v1066 = vunpack.c.l.b16 %v899
    %v1067 = vunpack.c.l.b16 %v900
    %v1068 = vunpack.c.l.b16 %v901
    %v1069 = vunpack.c.l.b16 %v902
    %v1070 = vunpack.c.l.b16 %v903
    %v1071 = vunpack.c.l.b16 %v904
    %v1072 = vunpack.c.l.b16 %v905
    %v1073 = vunpack.c.l.b16 %v906
    %v1074 = vunpack.c.l.b16 %v907
    %v1075 = vunpack.c.l.b16 %v908
    %v1076 = vunpack.c.l.b16 %v909
    %v1077 = vunpack.c.l.b16 %v910
    %v1078 = vunpack.c.l.b16 %v911
    %v1079 = vunpack.c.l.b16 %v912
    %v1080 = vunpack.c.l.b16 %v913
    %v1081 = vunpack.c.l.b16 %v914
    %v1082 = vpack.c.b16 %v1003, %v1002
    %v1083 = vpack.c.b16 %v1005, %v1004
    %v1084 = vpack.c.b16 %v1007, %v1006
    %v1085 = vpack.c.b16 %v1009, %v1008
    %v1086 = vpack.c.b16 %v1011, %v1010
    %v1087 = vpack.c.b16 %v1013, %v1012
    %v1088 = vpack.c.b16 %v1015, %v1014
    %v1089 = vpack.c.b16 %v1017, %v1016
    %v1090 = vpack.c.b16 %v1019, %v1018
    %v1091 = vpack.c.b16 %v1021, %v1020
    %v1092 = vpack.c.b16 %v1023, %v1022
    %v1093 = vpack.c.b16 %v1025, %v1024
    %v1094 = vpack.c.b16 %v1027, %v1026
    %v1095 = vpack.c.b16 %v1029, %v1028
    %v1096 = vpack.c.b16 %v1031, %v1030
    %v1097 = vpack.c.b16 %v1033, %v1032
    %v1098 = vpack.c.b16 %v1035, %v1034
    %v1099 = vpack.c.b16 %v1037, %v1036
    %v1100 = vpack.c.b16 %v1039, %v1038
    %v1101 = vpack.c.b16 %v1041, %v1040
    %v1102 = vpack.c.b16 %v1043, %v1042
    %v1103 = vpack.c.b16 %v1045, %v1044
    %v1104 = vpack.c.b16 %v1047, %v1046
    %v1105 = vpack.c.b16 %v1049, %v1048
    %v1106 = vpack.c.b16 %v1051, %v1050
    %v1107 = vpack.c.b16 %v1053, %v1052
    %v1108 = vpack.c.b16 %v1055, %v1054
    %v1109 = vpack.c.b16 %v1057, %v1056
    %v1110 = vpack.c.b16 %v1059, %v1058
    %v1111 = vpack.c.b16 %v1061, %v1060
    %v1112 = vpack.c.b16 %v1063, %v1062
    %v1113 = vpack.c.b16 %v1065, %v1064
    %v1114 = vpack.c.b16 %v1067, %v1066
    %v1115 = vpack.c.b16 %v1069, %v1068
    %v1116 = vpack.c.b16 %v1071, %v1070
    %v1117 = vpack.c.b16 %v1073, %v1072
    %v1118 = vpack.c.b16 %v1075, %v1074
    %v1119 = vpack.c.b16 %v1077, %v1076
    %v1120 = vpack.c.b16 %v1079, %v1078
    %v1121 = vpack.c.b16 %v1081, %v1080
    %1162 = vmatprep.subr.bf16.mxu0 0
    %1163 = vmatpush1.bf16.msra.mxu0 %v1082
    %1164 = vmatprep.subr.bf16.mxu0 0
    %1165 = vmatpush1.bf16.msra.mxu0 %v1083
    %1166 = vmatprep.subr.bf16.mxu0 0
    %1167 = vmatpush1.bf16.msra.mxu0 %v1084
    %1168 = vmatprep.subr.bf16.mxu0 0
    %1169 = vmatpush1.bf16.msra.mxu0 %v1085
    %1170 = vmatprep.subr.bf16.mxu0 0
    %1171 = vmatpush1.bf16.msra.mxu0 %v1086
    %1172 = vmatprep.subr.bf16.mxu0 0
    %1173 = vmatpush1.bf16.msra.mxu0 %v1087
    %1174 = vmatprep.subr.bf16.mxu0 0
    %1175 = vmatpush1.bf16.msra.mxu0 %v1088
    %1176 = vmatprep.subr.bf16.mxu0 0
    %1177 = vmatpush1.bf16.msra.mxu0 %v1089
    %1178 = vmatprep.subr.bf16.mxu0 0
    %1179 = vmatpush1.bf16.msra.mxu0 %v1090
    %1180 = vmatprep.subr.bf16.mxu0 0
    %1181 = vmatpush1.bf16.msra.mxu0 %v1091
    %1182 = vmatprep.subr.bf16.mxu0 0
    %1183 = vmatpush1.bf16.msra.mxu0 %v1092
    %1184 = vmatprep.subr.bf16.mxu0 0
    %1185 = vmatpush1.bf16.msra.mxu0 %v1093
    %1186 = vmatprep.subr.bf16.mxu0 0
    %1187 = vmatpush1.bf16.msra.mxu0 %v1094
    %1188 = vmatprep.subr.bf16.mxu0 0
    %1189 = vmatpush1.bf16.msra.mxu0 %v1095
    %1190 = vmatprep.subr.bf16.mxu0 0
    %1191 = vmatpush1.bf16.msra.mxu0 %v1096
    %1192 = vmatprep.subr.bf16.mxu0 0
    %1193 = vmatpush1.bf16.msra.mxu0 %v1097
    %1194 = vmatprep.mubr.bf16.mxu0 %v826
    %1195 = vmatmul.mubr.bf16.gmra.mrb[0].mxu0 %v825
    %v1196 = vpop.f32.mrb[0].mxu0
    %v1197 = vadd.f32 %v920, %v1196
    %v1198 = vpop.f32.mrb[0].mxu0
    %v1199 = vpop.f32.mrb[0].mxu0
    %v1200 = vadd.f32 %v920, %v1199
    %v1201 = vpop.f32.mrb[0].mxu0
    %1202 = vmatprep.mubr.bf16.mxu0 %v831
    %1203 = vmatmul.mubr.bf16.gmra.mrb[0].mxu0 %v830
    %v1204 = vpop.f32.mrb[0].mxu0
    %v1205 = vadd.f32 %v920, %v1204
    %v1206 = vpop.f32.mrb[0].mxu0
    %v1207 = vpop.f32.mrb[0].mxu0
    %v1208 = vpop.f32.mrb[0].mxu0
    %1209 = vdwg.mxu0
    %1210 = vmatprep.subr.bf16.mxu0 0
    %1211 = vmatpush1.bf16.msra.mxu0 %v1098
    %1212 = vmatprep.subr.bf16.mxu0 0
    %1213 = vmatpush1.bf16.msra.mxu0 %v1099
    %1214 = vmatprep.subr.bf16.mxu0 0
    %1215 = vmatpush1.bf16.msra.mxu0 %v1100
    %1216 = vmatprep.subr.bf16.mxu0 0
    %1217 = vmatpush1.bf16.msra.mxu0 %v1101
    %1218 = vmatprep.subr.bf16.mxu0 0
    %1219 = vmatpush1.bf16.msra.mxu0 %v1102
    %1220 = vmatprep.subr.bf16.mxu0 0
    %1221 = vmatpush1.bf16.msra.mxu0 %v1103
    %1222 = vmatprep.subr.bf16.mxu0 0
    %1223 = vmatpush1.bf16.msra.mxu0 %v1104
    %1224 = vmatprep.subr.bf16.mxu0 0
    %1225 = vmatpush1.bf16.msra.mxu0 %v1105
    %1226 = vmatprep.subr.bf16.mxu0 0
    %1227 = vmatpush1.bf16.msra.mxu0 %v1106
    %1228 = vmatprep.subr.bf16.mxu0 0
    %1229 = vmatpush1.bf16.msra.mxu0 %v1107
    %1230 = vmatprep.subr.bf16.mxu0 0
    %1231 = vmatpush1.bf16.msra.mxu0 %v1108
    %1232 = vmatprep.subr.bf16.mxu0 0
    %1233 = vmatpush1.bf16.msra.mxu0 %v1109
    %1234 = vmatprep.subr.bf16.mxu0 0
    %1235 = vmatpush1.bf16.msra.mxu0 %v1110
    %1236 = vmatprep.subr.bf16.mxu0 0
    %1237 = vmatpush1.bf16.msra.mxu0 %v1111
    %1238 = vmatprep.subr.bf16.mxu0 0
    %1239 = vmatpush1.bf16.msra.mxu0 %v1112
    %1240 = vmatprep.subr.bf16.mxu0 0
    %1241 = vmatpush1.bf16.msra.mxu0 %v1113
    %1242 = vmatprep.mubr.bf16.mxu0 %v828
    %1243 = vmatmul.mubr.bf16.gmra.mrb[0].mxu0 %v827
    %v1244 = vpop.f32.mrb[0].mxu0
    %v1245 = vadd.f32 %v1197, %v1244
    %v1246 = vpop.f32.mrb[0].mxu0
    %v1247 = vpop.f32.mrb[0].mxu0
    %v1248 = vadd.f32 %v1200, %v1247
    %v1249 = vpop.f32.mrb[0].mxu0
    %1250 = vmatprep.mubr.bf16.mxu0 %v833
    %1251 = vmatmul.mubr.bf16.gmra.mrb[0].mxu0 %v832
    %v1252 = vpop.f32.mrb[0].mxu0
    %v1253 = vadd.f32 %v1205, %v1252
    %v1254 = vpop.f32.mrb[0].mxu0
    %v1255 = vpop.f32.mrb[0].mxu0
    %v1256 = vpop.f32.mrb[0].mxu0
    %1257 = vdwg.mxu0
    %1258 = vmatprep.subr.bf16.mxu0 0
    %1259 = vmatpush1.bf16.msra.mxu0 %v1114
    %1260 = vmatprep.subr.bf16.mxu0 0
    %1261 = vmatpush1.bf16.msra.mxu0 %v1115
    %1262 = vmatprep.subr.bf16.mxu0 0
    %1263 = vmatpush1.bf16.msra.mxu0 %v1116
    %1264 = vmatprep.subr.bf16.mxu0 0
    %1265 = vmatpush1.bf16.msra.mxu0 %v1117
    %1266 = vmatprep.subr.bf16.mxu0 0
    %1267 = vmatpush1.bf16.msra.mxu0 %v1118
    %1268 = vmatprep.subr.bf16.mxu0 0
    %1269 = vmatpush1.bf16.msra.mxu0 %v1119
    %1270 = vmatprep.subr.bf16.mxu0 0
    %1271 = vmatpush1.bf16.msra.mxu0 %v1120
    %1272 = vmatprep.subr.bf16.mxu0 0
    %1273 = vmatpush1.bf16.msra.mxu0 %v1121
    %1274 = vmatprep.subr.bf16.mxu0 0
    %1275 = vmatpush1.bf16.msra.mxu0 0
    %1276 = vmatprep.subr.bf16.mxu0 0
    %1277 = vmatpush1.bf16.msra.mxu0 0
    %1278 = vmatprep.subr.bf16.mxu0 0
    %1279 = vmatpush1.bf16.msra.mxu0 0
    %1280 = vmatprep.subr.bf16.mxu0 0
    %1281 = vmatpush1.bf16.msra.mxu0 0
    %1282 = vmatprep.subr.bf16.mxu0 0
    %1283 = vmatpush1.bf16.msra.mxu0 0
    %1284 = vmatprep.subr.bf16.mxu0 0
    %1285 = vmatpush1.bf16.msra.mxu0 0
    %1286 = vmatprep.subr.bf16.mxu0 0
    %1287 = vmatpush1.bf16.msra.mxu0 0
    %1288 = vmatprep.subr.bf16.mxu0 0
    %1289 = vmatpush1.bf16.msra.mxu0 0
    %1290 = vmatprep.mubr.bf16.mxu0 0
    %1291 = vmatmul.mubr.bf16.gmra.mrb[0].mxu0 %v829
    %v1292 = vpop.f32.mrb[0].mxu0
    %v1293 = vadd.f32 %v1245, %v1292
    %v1294 = vpop.f32.mrb[0].mxu0
    %v1295 = vpop.f32.mrb[0].mxu0
    %v1296 = vadd.f32 %v1248, %v1295
    %v1297 = vpop.f32.mrb[0].mxu0
    %1298 = vmatprep.mubr.bf16.mxu0 0
    %1299 = vmatmul.mubr.bf16.gmra.mrb[0].mxu0 %v834
    %v1300 = vpop.f32.mrb[0].mxu0
    %v1301 = vadd.f32 %v1253, %v1300
    %v1302 = vpop.f32.mrb[0].mxu0
    %v1303 = vpop.f32.mrb[0].mxu0
    %v1304 = vpop.f32.mrb[0].mxu0
    %1305 = vdwg.mxu0
    %v1306 = vmul.f32 %v1293, 0.3
    %v1307 = vmul.f32 %v1296, 0.3
    %v1308 = vmul.f32 %v1301, 0.3
    %v1309 = vadd.f32 %v101, %v1306
    %v1310 = vadd.f32 %v102, %v1307
    %v1311 = vadd.f32 %v103, %v1308
    %1312 = vst [vmem:[%s5] sm:$0xff] %v1309
    %1313 = vst [vmem:[%s5 + $0x8] sm:$0xff] %v1310
    %1314 = vst [vmem:[%s5 + $0x10] sm:$0xff] %v1311
    // Predicated region
    $region30: #{resblock_pallas.1} parent=1 // pred_check
      _
    $region31: #{resblock_pallas.1} parent=1 // pred_check_branch
      %1316 = sbr.rel (0) target = $region33
    $region32: #{resblock_pallas.1} parent=1 // pred_region
      _
    $region33: #{resblock_pallas.1} parent=1 // pred_fallthru
      _
    // Predicated region
    $region34: #{resblock_pallas.1} parent=1 // pred_check
      _
    $region35: #{resblock_pallas.1} parent=1 // pred_check_branch
      %1318 = sbr.rel (0) target = $region37
    $region36: #{resblock_pallas.1} parent=1 // pred_region
      _
    $region37: #{resblock_pallas.1} parent=1 // pred_fallthru
      _
    %1319 = vsyncpa [#allocation3], 1
    %1320 = vsyncpa [#allocation5], 1

</llo_original>
